<compile_context>
chip_gen: v6e
topology: v6e:2x2x1
jax: 0.10.0
libtpu: 0.0.40
codegen_flags: <defaults>
</compile_context>

<pallas_src>
import jax
import jax.numpy as jnp
from jax.experimental import pallas as pl
from jax.experimental.pallas import tpu as pltpu


# ----------------------------------------------------------------------------
# helpers
# ----------------------------------------------------------------------------
def _round_up(v, m):
    return ((v + m - 1) // m) * m


def _plan_tiles(n):
    """Pick (n_pad, tm_proj, tm_attn, tn_attn).

    Constraints:
      * tn (lane/column tile of the mask and of the source features) must be a
        multiple of 128 or the full padded extent.
      * row tiles only need to be multiples of 8.
      * prefer >=2 grid steps on each axis so the 'parallel' row axis can shard
        across both TensorCores on v7x.
    """
    if n <= 256:
        n_pad = _round_up(max(n, 2), 16)
        tn = n_pad                       # can't 128-tile a small graph -> full extent
        tm = max(8, n_pad // 2)          # 2 row steps
        return n_pad, tm, tm, tn
    n_pad = _round_up(n, 256)
    return n_pad, 256, 128, 256


_VMEM_LIMIT_CACHE = [None]


def _vmem_limit_bytes():
    """Generation-aware scoped-VMEM limit (~80% of per-core capacity)."""
    if _VMEM_LIMIT_CACHE[0] is None:
        try:
            cap = int(pltpu.get_tpu_info().vmem_capacity_bytes)
        except Exception:
            cap = 64 * 1024 * 1024       # conservative (v7x-sized) fallback
        _VMEM_LIMIT_CACHE[0] = max(32 * 1024 * 1024,
                                   min(int(cap * 0.8), cap - 8 * 1024 * 1024))
    return _VMEM_LIMIT_CACHE[0]


def _compiler_params(dims):
    return pltpu.CompilerParams(dimension_semantics=dims,
                                vmem_limit_bytes=_vmem_limit_bytes())


# ----------------------------------------------------------------------------
# Kernel A: per-head projection, head-major bf16 output (gridded over node rows)
# ----------------------------------------------------------------------------
def _make_project_kernel(num_heads):
    def kernel(x_ref, w_ref, h_ref):
        xb = x_ref[...].astype(jnp.bfloat16)          # bf16 MXU operand
        for k in range(num_heads):                    # static unroll, direct head-major store
            h_ref[k] = jnp.dot(xb, w_ref[k],
                               preferred_element_type=jnp.float32
                               ).astype(jnp.bfloat16)
    return kernel


# ----------------------------------------------------------------------------
# Kernel B: flash-style masked softmax attention + aggregation
#   grid = (dst-row tiles [parallel], src-col tiles [arbitrary])
# ----------------------------------------------------------------------------
def _make_attend_kernel(num_heads, apply_relu, negative_slope=0.2):
    def kernel(mask_ref, hcol_ref, hrow_ref, asrc_ref, adstT_ref, bias_ref,
               out_ref, m_sc, l_sc, acc_sc):
        j = pl.program_id(1)

        @pl.when(j == 0)
        def _init():
            m_sc[...] = jnp.full_like(m_sc, -jnp.inf)
            l_sc[...] = jnp.zeros_like(l_sc)
            acc_sc[...] = jnp.zeros_like(acc_sc)

        # additive mask bias for this tile, shared by all heads (hoisted)
        mask = mask_ref[...].astype(jnp.float32)                     # [TM, TN]

        for head in range(num_heads):                                # static unroll
            h_cols = hcol_ref[head]                                  # [TN, O] bf16 (sources)
            # attention logits for this tile, each in its natural layout:
            #   a_d: destinations in sublanes; a_s: sources in lanes (q @ k^T pattern)
            a_d = jnp.dot(hrow_ref[head], adstT_ref[:, head:head + 1],
                          preferred_element_type=jnp.float32)        # [TM, 1]
            a_s = jax.lax.dot_general(
                asrc_ref[head:head + 1, :], h_cols,
                dimension_numbers=(((1,), (1,)), ((), ())),
                preferred_element_type=jnp.float32)                  # [1, TN]
            e = a_d + a_s
            e = jnp.where(e > 0, e, negative_slope * e)              # LeakyReLU(0.2)
            e = e + mask
            # online (flash-style) softmax update
            m_prev = m_sc[head]
            m_new = jnp.maximum(m_prev, jnp.max(e, axis=-1, keepdims=True))
            corr = jnp.exp(m_prev - m_new)
            p = jnp.exp(e - m_new)
            l_sc[head] = corr * l_sc[head] + jnp.sum(p, axis=-1, keepdims=True)
            acc_sc[head] = corr * acc_sc[head] + jnp.dot(
                p.astype(jnp.bfloat16), h_cols, preferred_element_type=jnp.float32)
            m_sc[head] = m_new
            # TODO(synk): on v6e/v7x the exp/p math could run in bf16 (~2x EUP);
            # keep f32 on v5e.

        @pl.when(j == pl.num_programs(1) - 1)
        def _finalize():
            parts = [acc_sc[k] * pl.reciprocal(l_sc[k], approx=True)
                     for k in range(num_heads)]
            out = parts[0] if num_heads == 1 else jnp.concatenate(parts, axis=-1)
            out = out + bias_ref[...]
            if apply_relu:
                out = jnp.maximum(out, 0.0)
            # NOTE: fully-masked padded rows get ~uniform (garbage-but-finite)
            # attention; real rows never attend to them (-1e30 bias) and they are
            # sliced off in the wrapper.
            out_ref[...] = out
            # TODO(synk): for deployment shapes pad H*O up to a 128-lane multiple
            # to avoid masked vst.msk partial stores.

    return kernel


# ----------------------------------------------------------------------------
# One GATConv layer (concat=True): x_pad [Np, Fin] -> [Np, heads*out_dim]
# ----------------------------------------------------------------------------
def gat_conv(x_pad, mask_bias, params, *, apply_relu, n_pad, tm_proj, tm_attn, tn_attn):
    fin = x_pad.shape[1]
    heads, out_dim = params["heads"], params["out_dim"]
    ho = heads * out_dim

    # ---- kernel A: projection -----------------------------------------------
    h_hm = pl.pallas_call(
        _make_project_kernel(heads),
        out_shape=jax.ShapeDtypeStruct((heads, n_pad, out_dim), jnp.bfloat16),
        grid=(n_pad // tm_proj,),
        in_specs=[
            pl.BlockSpec((tm_proj, fin), lambda i: (i, 0)),           # x rows (pipelined)
            pl.BlockSpec((heads, fin, out_dim), lambda i: (0, 0, 0)), # W (resident)
        ],
        out_specs=pl.BlockSpec((heads, tm_proj, out_dim), lambda i: (0, i, 0)),
        compiler_params=_compiler_params(("parallel",)),
    )(x_pad, params["w"])

    # ---- kernel B: attention ------------------------------------------------
    grid = (n_pad // tm_attn, n_pad // tn_attn)
    out = pl.pallas_call(
        _make_attend_kernel(heads, apply_relu),
        out_shape=jax.ShapeDtypeStruct((n_pad, ho), jnp.float32),
        grid=grid,
        in_specs=[
            pl.BlockSpec((tm_attn, tn_attn), lambda i, j: (i, j)),          # mask bias tile
            pl.BlockSpec((heads, tn_attn, out_dim), lambda i, j: (0, j, 0)),# h source cols
            pl.BlockSpec((heads, tm_attn, out_dim), lambda i, j: (0, i, 0)),# h dest rows
            pl.BlockSpec((heads, out_dim), lambda i, j: (0, 0)),            # att_src (resident)
            pl.BlockSpec((out_dim, heads), lambda i, j: (0, 0)),            # att_dst^T (resident)
            pl.BlockSpec((1, ho), lambda i, j: (0, 0)),                     # bias (resident)
        ],
        out_specs=pl.BlockSpec((tm_attn, ho), lambda i, j: (i, 0)),
        scratch_shapes=[
            pltpu.VMEM((heads, tm_attn, 1), jnp.float32),        # running max
            pltpu.VMEM((heads, tm_attn, 1), jnp.float32),        # running denominator
            pltpu.VMEM((heads, tm_attn, out_dim), jnp.float32),  # running numerator
        ],
        compiler_params=_compiler_params(("parallel", "arbitrary")),
    )(mask_bias, h_hm, h_hm, params["att_src"], params["att_dst_t"], params["bias"])
    return out


# ----------------------------------------------------------------------------
# Fused (vision + text) linear + ReLU head kernel
# ----------------------------------------------------------------------------
def _linear_relu_kernel(x_ref, w_ref, b_ref, o_ref):
    y = jnp.dot(x_ref[...].astype(jnp.bfloat16), w_ref[...],
                preferred_element_type=jnp.float32)
    o_ref[...] = jnp.maximum(y + b_ref[...], 0.0)


def fused_heads(x_pad, w_cat, b_cat, *, tm):
    n_pad, din = x_pad.shape
    dout = w_cat.shape[1]
    return pl.pallas_call(
        _linear_relu_kernel,
        out_shape=jax.ShapeDtypeStruct((n_pad, dout), jnp.float32),
        grid=(n_pad // tm,),
        in_specs=[
            pl.BlockSpec((tm, din), lambda i: (i, 0)),
            pl.BlockSpec((din, dout), lambda i: (0, 0)),
            pl.BlockSpec((1, dout), lambda i: (0, 0)),
        ],
        out_specs=pl.BlockSpec((tm, dout), lambda i: (i, 0)),
        compiler_params=_compiler_params(("parallel",)),
    )(x_pad, w_cat, b_cat)


# ----------------------------------------------------------------------------
# Full GAT forward (eval mode: dropout is identity)
# ----------------------------------------------------------------------------
def gat_forward(x, adj, conv_params, head_w, head_b, hidden_dim):
    n = x.shape[0]
    n_pad, tm_proj, tm_attn, tn_attn = _plan_tiles(n)

    x_pad = jnp.pad(x, ((0, n_pad - n), (0, 0)))
    adj_pad = jnp.pad(adj, ((0, n_pad - n), (0, n_pad - n)))
    # additive mask bias computed ONCE per forward, shared by every layer
    mask_bias = jnp.where(adj_pad > 0, 0.0, -1e30).astype(jnp.bfloat16)
    # TODO(synk): on v5e, bit-pack the mask (uint32, 32 edges/word) to cut the
    # dominant Np^2 HBM traffic ~16x; decode with VPU shifts inside kernel B.

    num_layers = len(conv_params)
    h = x_pad
    for i, p in enumerate(conv_params):
        h = gat_conv(h, mask_bias, p, apply_relu=(i != num_layers - 1),
                     n_pad=n_pad, tm_proj=tm_proj, tm_attn=tm_attn, tn_attn=tn_attn)
        # TODO(synk): F.dropout between layers is identity in eval mode (training=False).

    heads_out = fused_heads(h, head_w, head_b, tm=tm_proj)

    x_out = h[:n]
    x_vision = heads_out[:n, :hidden_dim]
    x_text = heads_out[:n, hidden_dim:]
    return x_out, x_vision, x_text


# ----------------------------------------------------------------------------
# Deterministic parameter construction
# ----------------------------------------------------------------------------
def init_gat_params(key, in_dim, hidden_dim, num_layers, heads):
    conv_params = []
    layer_specs = [(in_dim, hidden_dim, heads)]
    for _ in range(num_layers - 2):
        layer_specs.append((hidden_dim * heads, hidden_dim, heads))
    layer_specs.append((hidden_dim * heads, hidden_dim, 1))

    for (fin, fout, h) in layer_specs:
        key, k1, k2, k3 = jax.random.split(key, 4)
        conv_params.append({
            # head-major projection weight [H, fin, O], pre-cast to bf16 (MXU operand)
            "w": (0.1 * jax.random.normal(k1, (h, fin, fout), jnp.float32)
                  ).astype(jnp.bfloat16),
            "att_src": (0.1 * jax.random.normal(k2, (h, fout), jnp.float32)
                        ).astype(jnp.bfloat16),
            # att_dst stored pre-transposed [O, H] so kernel B never transposes
            "att_dst_t": (0.1 * jax.random.normal(k3, (h, fout), jnp.float32)
                          ).T.astype(jnp.bfloat16),
            "bias": jnp.zeros((1, h * fout), jnp.float32),
            "heads": h,
            "out_dim": fout,
        })

    key, kv, kt = jax.random.split(key, 3)
    wv = 0.1 * jax.random.normal(kv, (hidden_dim, hidden_dim), jnp.float32)
    wt = 0.1 * jax.random.normal(kt, (hidden_dim, hidden_dim), jnp.float32)
    # vision/text head weights concatenated ONCE at init (fused head kernel)
    head_w = jnp.concatenate([wv, wt], axis=1).astype(jnp.bfloat16)
    head_b = jnp.concatenate([0.01 * jnp.ones((1, hidden_dim), jnp.float32),
                              0.01 * jnp.ones((1, hidden_dim), jnp.float32)], axis=1)
    return conv_params, head_w, head_b


def edge_index_to_adj(edge_index, num_nodes):
    """Dense mask adj[i, j] = 1 iff edge j -> i, plus self-loops (PyG default)."""
    src, dst = edge_index[0], edge_index[1]
    adj = jnp.zeros((num_nodes, num_nodes), jnp.float32).at[dst, src].set(1.0)
    adj = jnp.maximum(adj, jnp.eye(num_nodes, dtype=jnp.float32))
    return adj


if __name__ == "__main__":
    # Small graph, sized so kernel B's grid gets >=2 steps on BOTH axes
    # (n_pad=512 -> 4 dst-row tiles of 128, 2 src-col tiles of 256).
    N, E = 300, 1200
    IN_DIM, HIDDEN, NUM_LAYERS, HEADS = 8, 16, 3, 2

    key = jax.random.PRNGKey(0)
    key, kx, ke = jax.random.split(key, 3)
    x = jax.random.normal(kx, (N, IN_DIM), jnp.float32)
    edge_index = jax.random.randint(ke, (2, E), 0, N, dtype=jnp.int32)
    adj = edge_index_to_adj(edge_index, N)

    conv_params, head_w, head_b = init_gat_params(
        key, IN_DIM, HIDDEN, NUM_LAYERS, HEADS)

    x_out, x_vision, x_text = gat_forward(x, adj, conv_params, head_w, head_b, HIDDEN)
    jax.block_until_ready((x_out, x_vision, x_text))

    assert x_out.shape == (N, HIDDEN)
    assert x_vision.shape == (N, HIDDEN)
    assert x_text.shape == (N, HIDDEN)
    assert bool(jnp.all(jnp.isfinite(x_out)))
    assert bool(jnp.all(jnp.isfinite(x_vision)))
    assert bool(jnp.all(jnp.isfinite(x_text)))
    print("KERNEL_OK")
</pallas_src>

<mosaic_0001>
module attributes {stable_mosaic.version = 11 : i64} {
  func.func @kernel(%arg0: i32, %arg1: memref<256x8xf32, #tpu.memory_space<vmem>>, %arg2: memref<2x8x16xbf16, #tpu.memory_space<vmem>>, %arg3: memref<2x256x16xbf16, #tpu.memory_space<vmem>>) attributes {dimension_semantics = [#tpu.dimension_semantics<parallel>], iteration_bounds = array<i64: 2>, scalar_prefetch = 0 : i64, scratch_operands = 0 : i64, tpu.core_type = #tpu.core_type<tc>, window_params = [{transform_indices = @transform_0, window_bounds = array<i64: 256, 8>}, {pipeline_mode = #tpu.pipeline_mode<synchronous>, transform_indices = @transform_1, window_bounds = array<i64: 2, 8, 16>}, {transform_indices = @transform_2, window_bounds = array<i64: 2, 256, 16>}]} {
    %c0 = arith.constant 0 : index
    %c0_0 = arith.constant 0 : index
    %0 = vector.load %arg1[%c0, %c0_0] : memref<256x8xf32, #tpu.memory_space<vmem>>, vector<256x8xf32>
    %1 = arith.truncf %0 : vector<256x8xf32> to vector<256x8xbf16>
    %c0_1 = arith.constant 0 : index
    %c0_2 = arith.constant 0 : index
    %c0_3 = arith.constant 0 : index
    %2 = vector.load %arg2[%c0_1, %c0_2, %c0_3] : memref<2x8x16xbf16, #tpu.memory_space<vmem>>, vector<1x8x16xbf16>
    %3 = vector.shape_cast %2 : vector<1x8x16xbf16> to vector<8x16xbf16>
    %cst = arith.constant dense<0.000000e+00> : vector<256x16xf32>
    %4 = tpu.matmul %1, %3, %cst {dimension_numbers = #tpu.dot_dimension_numbers<[1], [0], [0], [1], [0, 0, 1, 1], [], []>} : vector<256x8xbf16>, vector<8x16xbf16>, vector<256x16xf32> -> vector<256x16xf32>
    %5 = arith.truncf %4 : vector<256x16xf32> to vector<256x16xbf16>
    %c0_4 = arith.constant 0 : index
    %c0_5 = arith.constant 0 : index
    %c0_6 = arith.constant 0 : index
    %6 = vector.load %arg3[%c0_4, %c0_5, %c0_6] : memref<2x256x16xbf16, #tpu.memory_space<vmem>>, vector<1x256x16xbf16>
    %7 = vector.shape_cast %6 : vector<1x256x16xbf16> to vector<256x16xbf16>
    %8 = vector.shape_cast %5 : vector<256x16xbf16> to vector<1x256x16xbf16>
    tpu.vector_store %arg3[%c0_4, %c0_5, %c0_6], %8 {strides = array<i32>} : memref<2x256x16xbf16, #tpu.memory_space<vmem>>, vector<1x256x16xbf16>,
    %c1 = arith.constant 1 : index
    %c0_7 = arith.constant 0 : index
    %c0_8 = arith.constant 0 : index
    %9 = vector.load %arg2[%c1, %c0_7, %c0_8] : memref<2x8x16xbf16, #tpu.memory_space<vmem>>, vector<1x8x16xbf16>
    %10 = vector.shape_cast %9 : vector<1x8x16xbf16> to vector<8x16xbf16>
    %cst_9 = arith.constant dense<0.000000e+00> : vector<256x16xf32>
    %11 = tpu.matmul %1, %10, %cst_9 {dimension_numbers = #tpu.dot_dimension_numbers<[1], [0], [0], [1], [0, 0, 1, 1], [], []>} : vector<256x8xbf16>, vector<8x16xbf16>, vector<256x16xf32> -> vector<256x16xf32>
    %12 = arith.truncf %11 : vector<256x16xf32> to vector<256x16xbf16>
    %c1_10 = arith.constant 1 : index
    %c0_11 = arith.constant 0 : index
    %c0_12 = arith.constant 0 : index
    %13 = vector.load %arg3[%c1_10, %c0_11, %c0_12] : memref<2x256x16xbf16, #tpu.memory_space<vmem>>, vector<1x256x16xbf16>
    %14 = vector.shape_cast %13 : vector<1x256x16xbf16> to vector<256x16xbf16>
    %15 = vector.shape_cast %12 : vector<256x16xbf16> to vector<1x256x16xbf16>
    tpu.vector_store %arg3[%c1_10, %c0_11, %c0_12], %15 {strides = array<i32>} : memref<2x256x16xbf16, #tpu.memory_space<vmem>>, vector<1x256x16xbf16>,
    return
  }
  func.func @transform_0(%arg0: i32) -> (i32, i32) {
    %c0_i32 = arith.constant 0 : i32
    %c0_i32_0 = arith.constant 0 : i32
    return %arg0, %c0_i32 : i32, i32
  }
  func.func @transform_1(%arg0: i32) -> (i32, i32, i32) {
    %c0_i32 = arith.constant 0 : i32
    %c0_i32_0 = arith.constant 0 : i32
    %c0_i32_1 = arith.constant 0 : i32
    %c0_i32_2 = arith.constant 0 : i32
    return %c0_i32, %c0_i32_0, %c0_i32_1 : i32, i32, i32
  }
  func.func @transform_2(%arg0: i32) -> (i32, i32, i32) {
    %c0_i32 = arith.constant 0 : i32
    %c0_i32_0 = arith.constant 0 : i32
    %c0_i32_1 = arith.constant 0 : i32
    return %c0_i32, %arg0, %c0_i32_0 : i32, i32, i32
  }
}

</mosaic_0001>

<llo_original>
// kernel: tpu_custom_call.1
$region0: #{tpu_custom_call.1}
  #allocation0 [shape = 'u32[]', space=smem, size = 0x4, offset = 0x4, fixed_abs, tag = 'smem constant byte address 0x4 - core index']
  #allocation1 [shape = 'u32[144,128]{1,0:T(1,128)}', space=vmem, size = 0x12000, scoped, tag = 'internal scratch']
  %s0 = inlined_call_operand.vmem [shape: f32[512,8], index: 0, kind: input, shape index: {}]
  %s1 = inlined_call_operand.vmem [shape: bf16[2,8,16], index: 1, kind: input, shape index: {}]
  %s2 = inlined_call_operand.vmem [shape: bf16[2,512,16], index: 2, kind: output, shape index: {}]
  %s3 = sld [smem:[#allocation0]]
  $region78: #{tpu_custom_call.1} parent=0
    _
  %s5 = ssub.s32 1, %s3
  %s6 = scalar_select 0, %s5, %s3
  $region1: #{tpu_custom_call.1} parent=0
    #allocation2 [shape = 'u8[262144]{0}', space=vmem, size = 0x40000, scoped, tag = 'output window, operand 0']
    loop: start=0, step=1, limit=4
    $region2: #{tpu_custom_call.1} parent=1 // loop_pre_header
      _
    $region3: #{tpu_custom_call.1} parent=1 // loop_header
      %s8 = sphi 0, %s12
      %p9 = scmp.ge.s32.totalorder %s8, 4
      %s18 = sphi 0, %s20
      %s21 = sphi 0, %s18
      %s22 = sphi 0, %s21
      %s38 = sphi 0, %s22
      %s42 = sphi 0, %s42
      %s44 = sphi 0, %s42
      %s45 = sphi 0, %s44
      %s59 = sphi 0, %s45
      %s65 = sphi 0, %s67
      %s68 = sphi 0, %s65
      %s69 = sphi 0, %s68
      %s85 = sphi 0, %s69
    $region4: #{tpu_custom_call.1} parent=1 // loop_header_branch
      %11 = sbr.rel (%p9) target = $region8
    $region5: #{tpu_custom_call.1} parent=1 // loop_body
      %s13 = ssub.s32 %s8, 1
      %s14 = ssub.s32 %s8, 2
      %s15 = sadd.s32 %s8, 1
      %s16 = ssub.s32 %s8, %s15
      %p17 = scmp.eq.s32.totalorder %s16, 0
      %s19 = sadd.s32 %s18, 1
      %s20 = scalar_select %p17, %s18, %s19
      %p23 = pneg %p17
      %p24 = scmp.eq.s32.totalorder %s8, 1
      %p25 = por %p23, %p24
      %p26 = scmp.ne.s32.totalorder %s18, %s21
      %p27 = scmp.eq.s32.totalorder %s8, 0
      %p28 = por %p26, %p27
      %p29 = scmp.ne.s32.totalorder %s18, %s21
      %p30 = scmp.eq.s32.totalorder %s13, 1
      %p31 = por %p29, %p30
      %p32 = scmp.ne.s32.totalorder %s21, %s22
      %p33 = scmp.eq.s32.totalorder %s13, 0
      %p34 = por %p32, %p33
      %p35 = scmp.ne.s32.totalorder %s21, %s22
      %p36 = scmp.eq.s32.totalorder %s14, 1
      %p37 = por %p35, %p36
      %p39 = scmp.ne.s32.totalorder %s22, %s38
      %p40 = scmp.eq.s32.totalorder %s14, 0
      %p41 = por %p39, %p40
      %s43 = sadd.s32 %s42, 1
      %p46 = scmp.eq.s32.totalorder %s8, 1
      %p47 = scmp.ne.s32.totalorder %s42, %s44
      %p48 = scmp.eq.s32.totalorder %s8, 0
      %p49 = por %p47, %p48
      %p50 = scmp.ne.s32.totalorder %s42, %s44
      %p51 = scmp.eq.s32.totalorder %s13, 1
      %p52 = por %p50, %p51
      %p53 = scmp.ne.s32.totalorder %s44, %s45
      %p54 = scmp.eq.s32.totalorder %s13, 0
      %p55 = por %p53, %p54
      %p56 = scmp.ne.s32.totalorder %s44, %s45
      %p57 = scmp.eq.s32.totalorder %s14, 1
      %p58 = por %p56, %p57
      %p60 = scmp.ne.s32.totalorder %s45, %s59
      %p61 = scmp.eq.s32.totalorder %s14, 0
      %p62 = por %p60, %p61
      %s63 = ssub.s32 %s8, %s15
      %p64 = scmp.eq.s32.totalorder %s63, 0
      %s66 = sadd.s32 %s65, 1
      %s67 = scalar_select %p64, %s65, %s66
      %p70 = pneg %p64
      %p71 = scmp.eq.s32.totalorder %s8, 1
      %p72 = por %p70, %p71
      %p73 = scmp.ne.s32.totalorder %s65, %s68
      %p74 = scmp.eq.s32.totalorder %s8, 0
      %p75 = por %p73, %p74
      %p76 = scmp.ne.s32.totalorder %s65, %s68
      %p77 = scmp.eq.s32.totalorder %s13, 1
      %p78 = por %p76, %p77
      %p79 = scmp.ne.s32.totalorder %s68, %s69
      %p80 = scmp.eq.s32.totalorder %s13, 0
      %p81 = por %p79, %p80
      %p82 = scmp.ne.s32.totalorder %s68, %s69
      %p83 = scmp.eq.s32.totalorder %s14, 1
      %p84 = por %p82, %p83
      %p86 = scmp.ne.s32.totalorder %s69, %s85
      %p87 = scmp.eq.s32.totalorder %s14, 0
      %p88 = por %p86, %p87
      %p89 = scmp.le.s32.totalorder 1, %s8
      %p90 = scmp.lt.s32.totalorder %s8, 3
      %p91 = pnand %p89, %p90
      %p92 = pneg %p91
      // Predicated region
      $region9: #{tpu_custom_call.1} parent=5 // pred_check
        _
      $region10: #{tpu_custom_call.1} parent=5 // pred_check_branch
        %94 = sbr.rel (%p91) target = $region12
      $region11: #{tpu_custom_call.1} parent=5 // pred_region
        %s95 = ssub.s32 %s8, 1
        // Predicated region
        $region13: #{tpu_custom_call.1} parent=11 // pred_check
          %p96 = pneg %p55
        $region14: #{tpu_custom_call.1} parent=11 // pred_check_branch
          %98 = sbr.rel (%p96) target = $region16
        $region15: #{tpu_custom_call.1} parent=11 // pred_region
          _
        $region16: #{tpu_custom_call.1} parent=11 // pred_fallthru
          _
      $region12: #{tpu_custom_call.1} parent=5 // pred_fallthru
        _
      %p99 = scmp.lt.s32.totalorder %s8, 2
      // Predicated region
      $region17: #{tpu_custom_call.1} parent=5 // pred_check
        %p100 = pneg %p99
      $region18: #{tpu_custom_call.1} parent=5 // pred_check_branch
        %102 = sbr.rel (%p100) target = $region20
      $region19: #{tpu_custom_call.1} parent=5 // pred_region
        // Predicated region
        $region21: #{tpu_custom_call.1} parent=19 // pred_check
          %p103 = pneg %p28
        $region22: #{tpu_custom_call.1} parent=19 // pred_check_branch
          %105 = sbr.rel (%p103) target = $region24
        $region23: #{tpu_custom_call.1} parent=19 // pred_region
          %s106 = smul.u32 32, %s8
          %p107 = scmp.lt.s32.totalorder %s106, 63
          %s108 = scalar_select %p107, %s106, 63
          %s109 = smul.addr %s108, 8
          %s110 = scalar_lea.vmem %s0, %s109
          %s111 = smul.u32 32, %s8
        $region24: #{tpu_custom_call.1} parent=19 // pred_fallthru
          _
      $region20: #{tpu_custom_call.1} parent=5 // pred_fallthru
        _
      %p112 = scmp.le.s32.totalorder 1, %s8
      %p113 = scmp.lt.s32.totalorder %s8, 3
      %p114 = pnand %p112, %p113
      %p115 = pneg %p114
      // Predicated region
      $region25: #{tpu_custom_call.1} parent=5 // pred_check
        _
      $region26: #{tpu_custom_call.1} parent=5 // pred_check_branch
        %117 = sbr.rel (%p114) target = $region28
      $region27: #{tpu_custom_call.1} parent=5 // pred_region
        %s118 = ssub.s32 %s8, 1
        %s119 = smul.u32 32, %s13
        %p120 = scmp.lt.s32.totalorder %s119, 63
        %s121 = scalar_select %p120, %s119, 63
        %s122 = smul.addr %s121, 8
        %s123 = scalar_lea.vmem %s0, %s122
        %p124 = pneg %p34
        %p125 = pneg %p31
        %p126 = pneg %p55
        %p127 = pneg %p52
        %p128 = pneg %p81
        %p129 = pneg %p78
        %s130 = sand.u32 %s68, 1
        %s131 = sand.u32 %s68, 1
        %s132 = smul.addr %s131, 256
        %s133 = scalar_lea.vmem [#allocation2], %s132
        %s134 = smul.u32 32, %s13
        %p135 = scmp.lt.s32.totalorder %s134, 63
        %s136 = scalar_select %p135, %s134, 63
        %s137 = smul.addr %s136, 8
        %s138 = scalar_lea.vmem %s0, %s137
        %s139 = smul.u32 32, %s13
        %s140 = smul.u32 32, %s13
        %v142 = vld [vmem:[%s138] sm:$0xff]
        %v143 = vld [vmem:[%s138 + $0x8] sm:$0xff]
        %v144 = vld [vmem:[%s138 + $0x10] sm:$0xff]
        %v145 = vld [vmem:[%s138 + $0x18] sm:$0xff]
        %v146 = vld [vmem:[%s138 + $0x20] sm:$0xff]
        %v147 = vld [vmem:[%s138 + $0x28] sm:$0xff]
        %v148 = vld [vmem:[%s138 + $0x30] sm:$0xff]
        %v149 = vld [vmem:[%s138 + $0x38] sm:$0xff]
        %v150 = vld [vmem:[%s138 + $0x40] sm:$0xff]
        %v151 = vld [vmem:[%s138 + $0x48] sm:$0xff]
        %v152 = vld [vmem:[%s138 + $0x50] sm:$0xff]
        %v153 = vld [vmem:[%s138 + $0x58] sm:$0xff]
        %v154 = vld [vmem:[%s138 + $0x60] sm:$0xff]
        %v155 = vld [vmem:[%s138 + $0x68] sm:$0xff]
        %v156 = vld [vmem:[%s138 + $0x70] sm:$0xff]
        %v157 = vld [vmem:[%s138 + $0x78] sm:$0xff]
        %v158 = vld [vmem:[%s138 + $0x80] sm:$0xff]
        %v159 = vld [vmem:[%s138 + $0x88] sm:$0xff]
        %v160 = vld [vmem:[%s138 + $0x90] sm:$0xff]
        %v161 = vld [vmem:[%s138 + $0x98] sm:$0xff]
        %v162 = vld [vmem:[%s138 + $0xa0] sm:$0xff]
        %v163 = vld [vmem:[%s138 + $0xa8] sm:$0xff]
        %v164 = vld [vmem:[%s138 + $0xb0] sm:$0xff]
        %v165 = vld [vmem:[%s138 + $0xb8] sm:$0xff]
        %v166 = vld [vmem:[%s138 + $0xc0] sm:$0xff]
        %v167 = vld [vmem:[%s138 + $0xc8] sm:$0xff]
        %v168 = vld [vmem:[%s138 + $0xd0] sm:$0xff]
        %v169 = vld [vmem:[%s138 + $0xd8] sm:$0xff]
        %v170 = vld [vmem:[%s138 + $0xe0] sm:$0xff]
        %v171 = vld [vmem:[%s138 + $0xe8] sm:$0xff]
        %v172 = vld [vmem:[%s138 + $0xf0] sm:$0xff]
        %v173 = vld [vmem:[%s138 + $0xf8] sm:$0xff]
        %v174 = vpack.c.bf16 %v143, %v142
        %v175 = vpack.c.bf16 %v145, %v144
        %v176 = vpack.c.bf16 %v147, %v146
        %v177 = vpack.c.bf16 %v149, %v148
        %v178 = vpack.c.bf16 %v151, %v150
        %v179 = vpack.c.bf16 %v153, %v152
        %v180 = vpack.c.bf16 %v155, %v154
        %v181 = vpack.c.bf16 %v157, %v156
        %v182 = vpack.c.bf16 %v159, %v158
        %v183 = vpack.c.bf16 %v161, %v160
        %v184 = vpack.c.bf16 %v163, %v162
        %v185 = vpack.c.bf16 %v165, %v164
        %v186 = vpack.c.bf16 %v167, %v166
        %v187 = vpack.c.bf16 %v169, %v168
        %v188 = vpack.c.bf16 %v171, %v170
        %v189 = vpack.c.bf16 %v173, %v172
        %v190 = vld [vmem:[%s1] sm:$0xf]
        %vm191 = vcmask 64512
        %v193 = vsel %vm191, %v174, 0
        %v196 = vsel %vm191, %v175, 0
        %v199 = vsel %vm191, %v176, 0
        %v202 = vsel %vm191, %v177, 0
        %v205 = vsel %vm191, %v178, 0
        %v208 = vsel %vm191, %v179, 0
        %v211 = vsel %vm191, %v180, 0
        %v214 = vsel %vm191, %v181, 0
        %v217 = vsel %vm191, %v182, 0
        %v220 = vsel %vm191, %v183, 0
        %v223 = vsel %vm191, %v184, 0
        %v226 = vsel %vm191, %v185, 0
        %v229 = vsel %vm191, %v186, 0
        %v232 = vsel %vm191, %v187, 0
        %v235 = vsel %vm191, %v188, 0
        %v238 = vsel %vm191, %v189, 0
        %vm240 = vcmask 1043456
        %v242 = vsel %vm240, %v190, 0
        %244 = vmatprep.subr.bf16.mxu0 0
        %245 = vmatpush1.bf16.msra.mxu0 0
        %246 = vmatprep.subr.bf16.mxu0 0
        %247 = vmatpush1.bf16.msra.mxu0 0
        %248 = vmatprep.subr.bf16.mxu0 0
        %249 = vmatpush1.bf16.msra.mxu0 0
        %250 = vmatprep.subr.bf16.mxu0 0
        %251 = vmatpush1.bf16.msra.mxu0 0
        %252 = vmatprep.subr.bf16.mxu0 0
        %253 = vmatpush1.bf16.msra.mxu0 0
        %254 = vmatprep.subr.bf16.mxu0 0
        %255 = vmatpush1.bf16.msra.mxu0 0
        %256 = vmatprep.subr.bf16.mxu0 0
        %257 = vmatpush1.bf16.msra.mxu0 0
        %258 = vmatprep.subr.bf16.mxu0 0
        %259 = vmatpush1.bf16.msra.mxu0 %v242
        %260 = vmatprep.subr.bf16.mxu0 0
        %261 = vmatpush2.bf16.msra.mxu0 0
        %262 = vmatprep.subr.bf16.mxu0 0
        %263 = vmatpush2.bf16.msra.mxu0 0
        %264 = vmatprep.subr.bf16.mxu0 0
        %265 = vmatpush2.bf16.msra.mxu0 0
        %266 = vmatprep.subr.bf16.mxu0 0
        %267 = vmatpush2.bf16.msra.mxu0 0
        %268 = vmatprep.subr.bf16.mxu0 0
        %269 = vmatpush2.bf16.msra.mxu0 0
        %270 = vmatprep.subr.bf16.mxu0 0
        %271 = vmatpush2.bf16.msra.mxu0 0
        %272 = vmatprep.subr.bf16.mxu0 0
        %273 = vmatpush2.bf16.msra.mxu0 0
        %274 = vmatprep.subr.bf16.mxu0 0
        %275 = vmatpush2.bf16.msra.mxu0 0
        %276 = vmatprep.mubr.bf16.mxu0 0
        %277 = vmatmul.mubr.bf16.gmra.mxu0 %v193
        %v278 = vpop.f32.mrf.mxu0
        %v279 = vadd.f32 0.0, %v278
        %v280 = vpop.f32.mrf.mxu0
        %v281 = vpop.f32.mrf.mxu0
        %v282 = vadd.f32 0.0, %v281
        %v283 = vpop.f32.mrf.mxu0
        %284 = vmatprep.mubr.bf16.mxu0 0
        %285 = vmatmul.mubr.bf16.gmra.mxu0 %v196
        %v286 = vpop.f32.mrf.mxu0
        %v287 = vadd.f32 0.0, %v286
        %v288 = vpop.f32.mrf.mxu0
        %v289 = vpop.f32.mrf.mxu0
        %v290 = vadd.f32 0.0, %v289
        %v291 = vpop.f32.mrf.mxu0
        %292 = vmatprep.mubr.bf16.mxu0 0
        %293 = vmatmul.mubr.bf16.gmra.mxu0 %v199
        %v294 = vpop.f32.mrf.mxu0
        %v295 = vadd.f32 0.0, %v294
        %v296 = vpop.f32.mrf.mxu0
        %v297 = vpop.f32.mrf.mxu0
        %v298 = vadd.f32 0.0, %v297
        %v299 = vpop.f32.mrf.mxu0
        %300 = vmatprep.mubr.bf16.mxu0 0
        %301 = vmatmul.mubr.bf16.gmra.mxu0 %v202
        %v302 = vpop.f32.mrf.mxu0
        %v303 = vadd.f32 0.0, %v302
        %v304 = vpop.f32.mrf.mxu0
        %v305 = vpop.f32.mrf.mxu0
        %v306 = vadd.f32 0.0, %v305
        %v307 = vpop.f32.mrf.mxu0
        %308 = vmatprep.mubr.bf16.mxu0 0
        %309 = vmatmul.mubr.bf16.gmra.mxu0 %v205
        %v310 = vpop.f32.mrf.mxu0
        %v311 = vadd.f32 0.0, %v310
        %v312 = vpop.f32.mrf.mxu0
        %v313 = vpop.f32.mrf.mxu0
        %v314 = vadd.f32 0.0, %v313
        %v315 = vpop.f32.mrf.mxu0
        %316 = vmatprep.mubr.bf16.mxu0 0
        %317 = vmatmul.mubr.bf16.gmra.mxu0 %v208
        %v318 = vpop.f32.mrf.mxu0
        %v319 = vadd.f32 0.0, %v318
        %v320 = vpop.f32.mrf.mxu0
        %v321 = vpop.f32.mrf.mxu0
        %v322 = vadd.f32 0.0, %v321
        %v323 = vpop.f32.mrf.mxu0
        %324 = vmatprep.mubr.bf16.mxu0 0
        %325 = vmatmul.mubr.bf16.gmra.mxu0 %v211
        %v326 = vpop.f32.mrf.mxu0
        %v327 = vadd.f32 0.0, %v326
        %v328 = vpop.f32.mrf.mxu0
        %v329 = vpop.f32.mrf.mxu0
        %v330 = vadd.f32 0.0, %v329
        %v331 = vpop.f32.mrf.mxu0
        %332 = vmatprep.mubr.bf16.mxu0 0
        %333 = vmatmul.mubr.bf16.gmra.mxu0 %v214
        %v334 = vpop.f32.mrf.mxu0
        %v335 = vadd.f32 0.0, %v334
        %v336 = vpop.f32.mrf.mxu0
        %v337 = vpop.f32.mrf.mxu0
        %v338 = vadd.f32 0.0, %v337
        %v339 = vpop.f32.mrf.mxu0
        %340 = vmatprep.mubr.bf16.mxu0 0
        %341 = vmatmul.mubr.bf16.gmra.mxu0 %v217
        %v342 = vpop.f32.mrf.mxu0
        %v343 = vadd.f32 0.0, %v342
        %v344 = vpop.f32.mrf.mxu0
        %v345 = vpop.f32.mrf.mxu0
        %v346 = vadd.f32 0.0, %v345
        %v347 = vpop.f32.mrf.mxu0
        %348 = vmatprep.mubr.bf16.mxu0 0
        %349 = vmatmul.mubr.bf16.gmra.mxu0 %v220
        %v350 = vpop.f32.mrf.mxu0
        %v351 = vadd.f32 0.0, %v350
        %v352 = vpop.f32.mrf.mxu0
        %v353 = vpop.f32.mrf.mxu0
        %v354 = vadd.f32 0.0, %v353
        %v355 = vpop.f32.mrf.mxu0
        %356 = vmatprep.mubr.bf16.mxu0 0
        %357 = vmatmul.mubr.bf16.gmra.mxu0 %v223
        %v358 = vpop.f32.mrf.mxu0
        %v359 = vadd.f32 0.0, %v358
        %v360 = vpop.f32.mrf.mxu0
        %v361 = vpop.f32.mrf.mxu0
        %v362 = vadd.f32 0.0, %v361
        %v363 = vpop.f32.mrf.mxu0
        %364 = vmatprep.mubr.bf16.mxu0 0
        %365 = vmatmul.mubr.bf16.gmra.mxu0 %v226
        %v366 = vpop.f32.mrf.mxu0
        %v367 = vadd.f32 0.0, %v366
        %v368 = vpop.f32.mrf.mxu0
        %v369 = vpop.f32.mrf.mxu0
        %v370 = vadd.f32 0.0, %v369
        %v371 = vpop.f32.mrf.mxu0
        %372 = vmatprep.mubr.bf16.mxu0 0
        %373 = vmatmul.mubr.bf16.gmra.mxu0 %v229
        %v374 = vpop.f32.mrf.mxu0
        %v375 = vadd.f32 0.0, %v374
        %v376 = vpop.f32.mrf.mxu0
        %v377 = vpop.f32.mrf.mxu0
        %v378 = vadd.f32 0.0, %v377
        %v379 = vpop.f32.mrf.mxu0
        %380 = vmatprep.mubr.bf16.mxu0 0
        %381 = vmatmul.mubr.bf16.gmra.mxu0 %v232
        %v382 = vpop.f32.mrf.mxu0
        %v383 = vadd.f32 0.0, %v382
        %v384 = vpop.f32.mrf.mxu0
        %v385 = vpop.f32.mrf.mxu0
        %v386 = vadd.f32 0.0, %v385
        %v387 = vpop.f32.mrf.mxu0
        %388 = vmatprep.mubr.bf16.mxu0 0
        %389 = vmatmul.mubr.bf16.gmra.mxu0 %v235
        %v390 = vpop.f32.mrf.mxu0
        %v391 = vadd.f32 0.0, %v390
        %v392 = vpop.f32.mrf.mxu0
        %v393 = vpop.f32.mrf.mxu0
        %v394 = vadd.f32 0.0, %v393
        %v395 = vpop.f32.mrf.mxu0
        %396 = vmatprep.mubr.bf16.mxu0 0
        %397 = vmatmul.mubr.bf16.gmra.mxu0 %v238
        %v398 = vpop.f32.mrf.mxu0
        %v399 = vadd.f32 0.0, %v398
        %v400 = vpop.f32.mrf.mxu0
        %v401 = vpop.f32.mrf.mxu0
        %v402 = vadd.f32 0.0, %v401
        %v403 = vpop.f32.mrf.mxu0
        %404 = vdwg.mxu0
        %v405 = vpack.c.bf16 %v282, %v279
        %v406 = vpack.c.bf16 %v290, %v287
        %v407 = vpack.c.bf16 %v298, %v295
        %v408 = vpack.c.bf16 %v306, %v303
        %v409 = vpack.c.bf16 %v314, %v311
        %v410 = vpack.c.bf16 %v322, %v319
        %v411 = vpack.c.bf16 %v330, %v327
        %v412 = vpack.c.bf16 %v338, %v335
        %v413 = vpack.c.bf16 %v346, %v343
        %v414 = vpack.c.bf16 %v354, %v351
        %v415 = vpack.c.bf16 %v362, %v359
        %v416 = vpack.c.bf16 %v370, %v367
        %v417 = vpack.c.bf16 %v378, %v375
        %v418 = vpack.c.bf16 %v386, %v383
        %v419 = vpack.c.bf16 %v394, %v391
        %v420 = vpack.c.bf16 %v402, %v399
        %v437 = vunpack.c.l.b16 %v405
        %v438 = vunpack.c.h.b16 %v405
        %v439 = vunpack.c.l.b16 %v406
        %v440 = vunpack.c.h.b16 %v406
        %v441 = vunpack.c.l.b16 %v407
        %v442 = vunpack.c.h.b16 %v407
        %v443 = vunpack.c.l.b16 %v408
        %v444 = vunpack.c.h.b16 %v408
        %v445 = vunpack.c.l.b16 %v409
        %v446 = vunpack.c.h.b16 %v409
        %v447 = vunpack.c.l.b16 %v410
        %v448 = vunpack.c.h.b16 %v410
        %v449 = vunpack.c.l.b16 %v411
        %v450 = vunpack.c.h.b16 %v411
        %v451 = vunpack.c.l.b16 %v412
        %v452 = vunpack.c.h.b16 %v412
        %v453 = vunpack.c.l.b16 %v413
        %v454 = vunpack.c.h.b16 %v413
        %v455 = vunpack.c.l.b16 %v414
        %v456 = vunpack.c.h.b16 %v414
        %v457 = vunpack.c.l.b16 %v415
        %v458 = vunpack.c.h.b16 %v415
        %v459 = vunpack.c.l.b16 %v416
        %v460 = vunpack.c.h.b16 %v416
        %v461 = vunpack.c.l.b16 %v417
        %v462 = vunpack.c.h.b16 %v417
        %v463 = vunpack.c.l.b16 %v418
        %v464 = vunpack.c.h.b16 %v418
        %v465 = vunpack.c.l.b16 %v419
        %v466 = vunpack.c.h.b16 %v419
        %v467 = vunpack.c.l.b16 %v420
        %v468 = vunpack.c.h.b16 %v420
        %v469 = vpack.c.b16 %v437, %v437
        %v470 = vpack.c.b16 %v438, %v438
        %v471 = vpack.c.b16 %v439, %v439
        %v472 = vpack.c.b16 %v440, %v440
        %v473 = vpack.c.b16 %v441, %v441
        %v474 = vpack.c.b16 %v442, %v442
        %v475 = vpack.c.b16 %v443, %v443
        %v476 = vpack.c.b16 %v444, %v444
        %v477 = vpack.c.b16 %v445, %v445
        %v478 = vpack.c.b16 %v446, %v446
        %v479 = vpack.c.b16 %v447, %v447
        %v480 = vpack.c.b16 %v448, %v448
        %v481 = vpack.c.b16 %v449, %v449
        %v482 = vpack.c.b16 %v450, %v450
        %v483 = vpack.c.b16 %v451, %v451
        %v484 = vpack.c.b16 %v452, %v452
        %v485 = vpack.c.b16 %v453, %v453
        %v486 = vpack.c.b16 %v454, %v454
        %v487 = vpack.c.b16 %v455, %v455
        %v488 = vpack.c.b16 %v456, %v456
        %v489 = vpack.c.b16 %v457, %v457
        %v490 = vpack.c.b16 %v458, %v458
        %v491 = vpack.c.b16 %v459, %v459
        %v492 = vpack.c.b16 %v460, %v460
        %v493 = vpack.c.b16 %v461, %v461
        %v494 = vpack.c.b16 %v462, %v462
        %v495 = vpack.c.b16 %v463, %v463
        %v496 = vpack.c.b16 %v464, %v464
        %v497 = vpack.c.b16 %v465, %v465
        %v498 = vpack.c.b16 %v466, %v466
        %v499 = vpack.c.b16 %v467, %v467
        %v500 = vpack.c.b16 %v468, %v468
        %vm533 = vcmask 125952
        %534 = vst.msk [vmem:[%s133] sm:$0xf] %vm533, %v469
        %535 = vst.msk [vmem:[%s133 + $0x4] sm:$0xf] %vm533, %v470
        %536 = vst.msk [vmem:[%s133 + $0x8] sm:$0xf] %vm533, %v471
        %537 = vst.msk [vmem:[%s133 + $0xc] sm:$0xf] %vm533, %v472
        %538 = vst.msk [vmem:[%s133 + $0x10] sm:$0xf] %vm533, %v473
        %539 = vst.msk [vmem:[%s133 + $0x14] sm:$0xf] %vm533, %v474
        %540 = vst.msk [vmem:[%s133 + $0x18] sm:$0xf] %vm533, %v475
        %541 = vst.msk [vmem:[%s133 + $0x1c] sm:$0xf] %vm533, %v476
        %542 = vst.msk [vmem:[%s133 + $0x20] sm:$0xf] %vm533, %v477
        %543 = vst.msk [vmem:[%s133 + $0x24] sm:$0xf] %vm533, %v478
        %544 = vst.msk [vmem:[%s133 + $0x28] sm:$0xf] %vm533, %v479
        %545 = vst.msk [vmem:[%s133 + $0x2c] sm:$0xf] %vm533, %v480
        %546 = vst.msk [vmem:[%s133 + $0x30] sm:$0xf] %vm533, %v481
        %547 = vst.msk [vmem:[%s133 + $0x34] sm:$0xf] %vm533, %v482
        %548 = vst.msk [vmem:[%s133 + $0x38] sm:$0xf] %vm533, %v483
        %549 = vst.msk [vmem:[%s133 + $0x3c] sm:$0xf] %vm533, %v484
        %550 = vst.msk [vmem:[%s133 + $0x40] sm:$0xf] %vm533, %v485
        %551 = vst.msk [vmem:[%s133 + $0x44] sm:$0xf] %vm533, %v486
        %552 = vst.msk [vmem:[%s133 + $0x48] sm:$0xf] %vm533, %v487
        %553 = vst.msk [vmem:[%s133 + $0x4c] sm:$0xf] %vm533, %v488
        %554 = vst.msk [vmem:[%s133 + $0x50] sm:$0xf] %vm533, %v489
        %555 = vst.msk [vmem:[%s133 + $0x54] sm:$0xf] %vm533, %v490
        %556 = vst.msk [vmem:[%s133 + $0x58] sm:$0xf] %vm533, %v491
        %557 = vst.msk [vmem:[%s133 + $0x5c] sm:$0xf] %vm533, %v492
        %558 = vst.msk [vmem:[%s133 + $0x60] sm:$0xf] %vm533, %v493
        %559 = vst.msk [vmem:[%s133 + $0x64] sm:$0xf] %vm533, %v494
        %560 = vst.msk [vmem:[%s133 + $0x68] sm:$0xf] %vm533, %v495
        %561 = vst.msk [vmem:[%s133 + $0x6c] sm:$0xf] %vm533, %v496
        %562 = vst.msk [vmem:[%s133 + $0x70] sm:$0xf] %vm533, %v497
        %563 = vst.msk [vmem:[%s133 + $0x74] sm:$0xf] %vm533, %v498
        %564 = vst.msk [vmem:[%s133 + $0x78] sm:$0xf] %vm533, %v499
        %565 = vst.msk [vmem:[%s133 + $0x7c] sm:$0xf] %vm533, %v500
        %s566 = scalar_lea.vmem %s1, 4
        %v567 = vld [vmem:[%s566] sm:$0xf]
        %v569 = vsel %vm240, %v567, 0
        %571 = vmatprep.subr.bf16.mxu0 0
        %572 = vmatpush1.bf16.msra.mxu0 0
        %573 = vmatprep.subr.bf16.mxu0 0
        %574 = vmatpush1.bf16.msra.mxu0 0
        %575 = vmatprep.subr.bf16.mxu0 0
        %576 = vmatpush1.bf16.msra.mxu0 0
        %577 = vmatprep.subr.bf16.mxu0 0
        %578 = vmatpush1.bf16.msra.mxu0 0
        %579 = vmatprep.subr.bf16.mxu0 0
        %580 = vmatpush1.bf16.msra.mxu0 0
        %581 = vmatprep.subr.bf16.mxu0 0
        %582 = vmatpush1.bf16.msra.mxu0 0
        %583 = vmatprep.subr.bf16.mxu0 0
        %584 = vmatpush1.bf16.msra.mxu0 0
        %585 = vmatprep.subr.bf16.mxu0 0
        %586 = vmatpush1.bf16.msra.mxu0 %v569
        %587 = vmatprep.subr.bf16.mxu0 0
        %588 = vmatpush2.bf16.msra.mxu0 0
        %589 = vmatprep.subr.bf16.mxu0 0
        %590 = vmatpush2.bf16.msra.mxu0 0
        %591 = vmatprep.subr.bf16.mxu0 0
        %592 = vmatpush2.bf16.msra.mxu0 0
        %593 = vmatprep.subr.bf16.mxu0 0
        %594 = vmatpush2.bf16.msra.mxu0 0
        %595 = vmatprep.subr.bf16.mxu0 0
        %596 = vmatpush2.bf16.msra.mxu0 0
        %597 = vmatprep.subr.bf16.mxu0 0
        %598 = vmatpush2.bf16.msra.mxu0 0
        %599 = vmatprep.subr.bf16.mxu0 0
        %600 = vmatpush2.bf16.msra.mxu0 0
        %601 = vmatprep.subr.bf16.mxu0 0
        %602 = vmatpush2.bf16.msra.mxu0 0
        %603 = vmatprep.mubr.bf16.mxu0 0
        %604 = vmatmul.mubr.bf16.gmra.mxu0 %v193
        %v605 = vpop.f32.mrf.mxu0
        %v606 = vadd.f32 0.0, %v605
        %v607 = vpop.f32.mrf.mxu0
        %v608 = vpop.f32.mrf.mxu0
        %v609 = vadd.f32 0.0, %v608
        %v610 = vpop.f32.mrf.mxu0
        %611 = vmatprep.mubr.bf16.mxu0 0
        %612 = vmatmul.mubr.bf16.gmra.mxu0 %v196
        %v613 = vpop.f32.mrf.mxu0
        %v614 = vadd.f32 0.0, %v613
        %v615 = vpop.f32.mrf.mxu0
        %v616 = vpop.f32.mrf.mxu0
        %v617 = vadd.f32 0.0, %v616
        %v618 = vpop.f32.mrf.mxu0
        %619 = vmatprep.mubr.bf16.mxu0 0
        %620 = vmatmul.mubr.bf16.gmra.mxu0 %v199
        %v621 = vpop.f32.mrf.mxu0
        %v622 = vadd.f32 0.0, %v621
        %v623 = vpop.f32.mrf.mxu0
        %v624 = vpop.f32.mrf.mxu0
        %v625 = vadd.f32 0.0, %v624
        %v626 = vpop.f32.mrf.mxu0
        %627 = vmatprep.mubr.bf16.mxu0 0
        %628 = vmatmul.mubr.bf16.gmra.mxu0 %v202
        %v629 = vpop.f32.mrf.mxu0
        %v630 = vadd.f32 0.0, %v629
        %v631 = vpop.f32.mrf.mxu0
        %v632 = vpop.f32.mrf.mxu0
        %v633 = vadd.f32 0.0, %v632
        %v634 = vpop.f32.mrf.mxu0
        %635 = vmatprep.mubr.bf16.mxu0 0
        %636 = vmatmul.mubr.bf16.gmra.mxu0 %v205
        %v637 = vpop.f32.mrf.mxu0
        %v638 = vadd.f32 0.0, %v637
        %v639 = vpop.f32.mrf.mxu0
        %v640 = vpop.f32.mrf.mxu0
        %v641 = vadd.f32 0.0, %v640
        %v642 = vpop.f32.mrf.mxu0
        %643 = vmatprep.mubr.bf16.mxu0 0
        %644 = vmatmul.mubr.bf16.gmra.mxu0 %v208
        %v645 = vpop.f32.mrf.mxu0
        %v646 = vadd.f32 0.0, %v645
        %v647 = vpop.f32.mrf.mxu0
        %v648 = vpop.f32.mrf.mxu0
        %v649 = vadd.f32 0.0, %v648
        %v650 = vpop.f32.mrf.mxu0
        %651 = vmatprep.mubr.bf16.mxu0 0
        %652 = vmatmul.mubr.bf16.gmra.mxu0 %v211
        %v653 = vpop.f32.mrf.mxu0
        %v654 = vadd.f32 0.0, %v653
        %v655 = vpop.f32.mrf.mxu0
        %v656 = vpop.f32.mrf.mxu0
        %v657 = vadd.f32 0.0, %v656
        %v658 = vpop.f32.mrf.mxu0
        %659 = vmatprep.mubr.bf16.mxu0 0
        %660 = vmatmul.mubr.bf16.gmra.mxu0 %v214
        %v661 = vpop.f32.mrf.mxu0
        %v662 = vadd.f32 0.0, %v661
        %v663 = vpop.f32.mrf.mxu0
        %v664 = vpop.f32.mrf.mxu0
        %v665 = vadd.f32 0.0, %v664
        %v666 = vpop.f32.mrf.mxu0
        %667 = vmatprep.mubr.bf16.mxu0 0
        %668 = vmatmul.mubr.bf16.gmra.mxu0 %v217
        %v669 = vpop.f32.mrf.mxu0
        %v670 = vadd.f32 0.0, %v669
        %v671 = vpop.f32.mrf.mxu0
        %v672 = vpop.f32.mrf.mxu0
        %v673 = vadd.f32 0.0, %v672
        %v674 = vpop.f32.mrf.mxu0
        %675 = vmatprep.mubr.bf16.mxu0 0
        %676 = vmatmul.mubr.bf16.gmra.mxu0 %v220
        %v677 = vpop.f32.mrf.mxu0
        %v678 = vadd.f32 0.0, %v677
        %v679 = vpop.f32.mrf.mxu0
        %v680 = vpop.f32.mrf.mxu0
        %v681 = vadd.f32 0.0, %v680
        %v682 = vpop.f32.mrf.mxu0
        %683 = vmatprep.mubr.bf16.mxu0 0
        %684 = vmatmul.mubr.bf16.gmra.mxu0 %v223
        %v685 = vpop.f32.mrf.mxu0
        %v686 = vadd.f32 0.0, %v685
        %v687 = vpop.f32.mrf.mxu0
        %v688 = vpop.f32.mrf.mxu0
        %v689 = vadd.f32 0.0, %v688
        %v690 = vpop.f32.mrf.mxu0
        %691 = vmatprep.mubr.bf16.mxu0 0
        %692 = vmatmul.mubr.bf16.gmra.mxu0 %v226
        %v693 = vpop.f32.mrf.mxu0
        %v694 = vadd.f32 0.0, %v693
        %v695 = vpop.f32.mrf.mxu0
        %v696 = vpop.f32.mrf.mxu0
        %v697 = vadd.f32 0.0, %v696
        %v698 = vpop.f32.mrf.mxu0
        %699 = vmatprep.mubr.bf16.mxu0 0
        %700 = vmatmul.mubr.bf16.gmra.mxu0 %v229
        %v701 = vpop.f32.mrf.mxu0
        %v702 = vadd.f32 0.0, %v701
        %v703 = vpop.f32.mrf.mxu0
        %v704 = vpop.f32.mrf.mxu0
        %v705 = vadd.f32 0.0, %v704
        %v706 = vpop.f32.mrf.mxu0
        %707 = vmatprep.mubr.bf16.mxu0 0
        %708 = vmatmul.mubr.bf16.gmra.mxu0 %v232
        %v709 = vpop.f32.mrf.mxu0
        %v710 = vadd.f32 0.0, %v709
        %v711 = vpop.f32.mrf.mxu0
        %v712 = vpop.f32.mrf.mxu0
        %v713 = vadd.f32 0.0, %v712
        %v714 = vpop.f32.mrf.mxu0
        %715 = vmatprep.mubr.bf16.mxu0 0
        %716 = vmatmul.mubr.bf16.gmra.mxu0 %v235
        %v717 = vpop.f32.mrf.mxu0
        %v718 = vadd.f32 0.0, %v717
        %v719 = vpop.f32.mrf.mxu0
        %v720 = vpop.f32.mrf.mxu0
        %v721 = vadd.f32 0.0, %v720
        %v722 = vpop.f32.mrf.mxu0
        %723 = vmatprep.mubr.bf16.mxu0 0
        %724 = vmatmul.mubr.bf16.gmra.mxu0 %v238
        %v725 = vpop.f32.mrf.mxu0
        %v726 = vadd.f32 0.0, %v725
        %v727 = vpop.f32.mrf.mxu0
        %v728 = vpop.f32.mrf.mxu0
        %v729 = vadd.f32 0.0, %v728
        %v730 = vpop.f32.mrf.mxu0
        %731 = vdwg.mxu0
        %v732 = vpack.c.bf16 %v609, %v606
        %v733 = vpack.c.bf16 %v617, %v614
        %v734 = vpack.c.bf16 %v625, %v622
        %v735 = vpack.c.bf16 %v633, %v630
        %v736 = vpack.c.bf16 %v641, %v638
        %v737 = vpack.c.bf16 %v649, %v646
        %v738 = vpack.c.bf16 %v657, %v654
        %v739 = vpack.c.bf16 %v665, %v662
        %v740 = vpack.c.bf16 %v673, %v670
        %v741 = vpack.c.bf16 %v681, %v678
        %v742 = vpack.c.bf16 %v689, %v686
        %v743 = vpack.c.bf16 %v697, %v694
        %v744 = vpack.c.bf16 %v705, %v702
        %v745 = vpack.c.bf16 %v713, %v710
        %v746 = vpack.c.bf16 %v721, %v718
        %v747 = vpack.c.bf16 %v729, %v726
        %v764 = vunpack.c.l.b16 %v732
        %v765 = vunpack.c.h.b16 %v732
        %v766 = vunpack.c.l.b16 %v733
        %v767 = vunpack.c.h.b16 %v733
        %v768 = vunpack.c.l.b16 %v734
        %v769 = vunpack.c.h.b16 %v734
        %v770 = vunpack.c.l.b16 %v735
        %v771 = vunpack.c.h.b16 %v735
        %v772 = vunpack.c.l.b16 %v736
        %v773 = vunpack.c.h.b16 %v736
        %v774 = vunpack.c.l.b16 %v737
        %v775 = vunpack.c.h.b16 %v737
        %v776 = vunpack.c.l.b16 %v738
        %v777 = vunpack.c.h.b16 %v738
        %v778 = vunpack.c.l.b16 %v739
        %v779 = vunpack.c.h.b16 %v739
        %v780 = vunpack.c.l.b16 %v740
        %v781 = vunpack.c.h.b16 %v740
        %v782 = vunpack.c.l.b16 %v741
        %v783 = vunpack.c.h.b16 %v741
        %v784 = vunpack.c.l.b16 %v742
        %v785 = vunpack.c.h.b16 %v742
        %v786 = vunpack.c.l.b16 %v743
        %v787 = vunpack.c.h.b16 %v743
        %v788 = vunpack.c.l.b16 %v744
        %v789 = vunpack.c.h.b16 %v744
        %v790 = vunpack.c.l.b16 %v745
        %v791 = vunpack.c.h.b16 %v745
        %v792 = vunpack.c.l.b16 %v746
        %v793 = vunpack.c.h.b16 %v746
        %v794 = vunpack.c.l.b16 %v747
        %v795 = vunpack.c.h.b16 %v747
        %v796 = vpack.c.b16 %v764, %v764
        %v797 = vpack.c.b16 %v765, %v765
        %v798 = vpack.c.b16 %v766, %v766
        %v799 = vpack.c.b16 %v767, %v767
        %v800 = vpack.c.b16 %v768, %v768
        %v801 = vpack.c.b16 %v769, %v769
        %v802 = vpack.c.b16 %v770, %v770
        %v803 = vpack.c.b16 %v771, %v771
        %v804 = vpack.c.b16 %v772, %v772
        %v805 = vpack.c.b16 %v773, %v773
        %v806 = vpack.c.b16 %v774, %v774
        %v807 = vpack.c.b16 %v775, %v775
        %v808 = vpack.c.b16 %v776, %v776
        %v809 = vpack.c.b16 %v777, %v777
        %v810 = vpack.c.b16 %v778, %v778
        %v811 = vpack.c.b16 %v779, %v779
        %v812 = vpack.c.b16 %v780, %v780
        %v813 = vpack.c.b16 %v781, %v781
        %v814 = vpack.c.b16 %v782, %v782
        %v815 = vpack.c.b16 %v783, %v783
        %v816 = vpack.c.b16 %v784, %v784
        %v817 = vpack.c.b16 %v785, %v785
        %v818 = vpack.c.b16 %v786, %v786
        %v819 = vpack.c.b16 %v787, %v787
        %v820 = vpack.c.b16 %v788, %v788
        %v821 = vpack.c.b16 %v789, %v789
        %v822 = vpack.c.b16 %v790, %v790
        %v823 = vpack.c.b16 %v791, %v791
        %v824 = vpack.c.b16 %v792, %v792
        %v825 = vpack.c.b16 %v793, %v793
        %v826 = vpack.c.b16 %v794, %v794
        %v827 = vpack.c.b16 %v795, %v795
        %s860 = scalar_lea.vmem %s133, 128 [#allocation2]
        %861 = vst.msk [vmem:[%s860] sm:$0xf] %vm533, %v796
        %862 = vst.msk [vmem:[%s860 + $0x4] sm:$0xf] %vm533, %v797
        %863 = vst.msk [vmem:[%s860 + $0x8] sm:$0xf] %vm533, %v798
        %864 = vst.msk [vmem:[%s860 + $0xc] sm:$0xf] %vm533, %v799
        %865 = vst.msk [vmem:[%s860 + $0x10] sm:$0xf] %vm533, %v800
        %866 = vst.msk [vmem:[%s860 + $0x14] sm:$0xf] %vm533, %v801
        %867 = vst.msk [vmem:[%s860 + $0x18] sm:$0xf] %vm533, %v802
        %868 = vst.msk [vmem:[%s860 + $0x1c] sm:$0xf] %vm533, %v803
        %869 = vst.msk [vmem:[%s860 + $0x20] sm:$0xf] %vm533, %v804
        %870 = vst.msk [vmem:[%s860 + $0x24] sm:$0xf] %vm533, %v805
        %871 = vst.msk [vmem:[%s860 + $0x28] sm:$0xf] %vm533, %v806
        %872 = vst.msk [vmem:[%s860 + $0x2c] sm:$0xf] %vm533, %v807
        %873 = vst.msk [vmem:[%s860 + $0x30] sm:$0xf] %vm533, %v808
        %874 = vst.msk [vmem:[%s860 + $0x34] sm:$0xf] %vm533, %v809
        %875 = vst.msk [vmem:[%s860 + $0x38] sm:$0xf] %vm533, %v810
        %876 = vst.msk [vmem:[%s860 + $0x3c] sm:$0xf] %vm533, %v811
        %877 = vst.msk [vmem:[%s860 + $0x40] sm:$0xf] %vm533, %v812
        %878 = vst.msk [vmem:[%s860 + $0x44] sm:$0xf] %vm533, %v813
        %879 = vst.msk [vmem:[%s860 + $0x48] sm:$0xf] %vm533, %v814
        %880 = vst.msk [vmem:[%s860 + $0x4c] sm:$0xf] %vm533, %v815
        %881 = vst.msk [vmem:[%s860 + $0x50] sm:$0xf] %vm533, %v816
        %882 = vst.msk [vmem:[%s860 + $0x54] sm:$0xf] %vm533, %v817
        %883 = vst.msk [vmem:[%s860 + $0x58] sm:$0xf] %vm533, %v818
        %884 = vst.msk [vmem:[%s860 + $0x5c] sm:$0xf] %vm533, %v819
        %885 = vst.msk [vmem:[%s860 + $0x60] sm:$0xf] %vm533, %v820
        %886 = vst.msk [vmem:[%s860 + $0x64] sm:$0xf] %vm533, %v821
        %887 = vst.msk [vmem:[%s860 + $0x68] sm:$0xf] %vm533, %v822
        %888 = vst.msk [vmem:[%s860 + $0x6c] sm:$0xf] %vm533, %v823
        %889 = vst.msk [vmem:[%s860 + $0x70] sm:$0xf] %vm533, %v824
        %890 = vst.msk [vmem:[%s860 + $0x74] sm:$0xf] %vm533, %v825
        %891 = vst.msk [vmem:[%s860 + $0x78] sm:$0xf] %vm533, %v826
        %892 = vst.msk [vmem:[%s860 + $0x7c] sm:$0xf] %vm533, %v827
        %s893 = sand.u32 %s68, 1
        %s894 = sand.u32 %s68, 1
        %s895 = smul.addr %s894, 256
        %s896 = scalar_lea.vmem [#allocation2], %s895
        // Predicated region
        $region29: #{tpu_custom_call.1} parent=27 // pred_check
          %p897 = pneg %p78
        $region30: #{tpu_custom_call.1} parent=27 // pred_check_branch
          %899 = sbr.rel (%p897) target = $region32
        $region31: #{tpu_custom_call.1} parent=27 // pred_region
          %s900 = smul.u32 32, %s13
          %s901 = smul.addr %s900, 4
          %s902 = scalar_lea.vmem %s2, %s901
          // Predicated region
          $region33: #{tpu_custom_call.1} parent=31 // pred_check
            _
          $region34: #{tpu_custom_call.1} parent=31 // pred_check_branch
            %904 = sbr.rel (0) target = $region36
          $region35: #{tpu_custom_call.1} parent=31 // pred_region
            // Predicated region
            $region37: #{tpu_custom_call.1} parent=35 // pred_check
              _
            $region38: #{tpu_custom_call.1} parent=35 // pred_check_branch
              %906 = sbr.rel target = $region40
            $region39: #{tpu_custom_call.1} parent=35 // pred_region
              // Predicated region
              $region52: #{tpu_custom_call.1} parent=39 // pred_check
                _
              $region53: #{tpu_custom_call.1} parent=39 // pred_check_branch
                %1048 = sbr.rel (0) target = $region55
              $region54: #{tpu_custom_call.1} parent=39 // pred_region
                loop: start=0, step=1, limit=1
                $region56: #{tpu_custom_call.1} parent=54 // loop_pre_header
                  _
                $region57: #{tpu_custom_call.1} parent=54 // loop_header
                  %s1050 = sphi 0, %s1054
                  %p1051 = scmp.ge.s32.totalorder %s1050, 1
                  %s1055 = sphi %s896, %s896
                  %s1056 = sphi %s902, %s902
                $region58: #{tpu_custom_call.1} parent=54 // loop_header_branch
                  %1053 = sbr.rel (%p1051) target = $region62
                $region59: #{tpu_custom_call.1} parent=54 // loop_body
                  _
                $region60: #{tpu_custom_call.1} parent=54 // loop_footer
                  %s1054 = sadd.s32 1, %s1050
                $region61: #{tpu_custom_call.1} parent=54 // loop_footer_branch
                  %1049 = sbr.rel target = $region57
                $region62: #{tpu_custom_call.1} parent=54 // loop_exit
                  _
                %s1058 = ssub.s32 16, 1
                loop: start=0, step=1, limit=1
                $region63: #{tpu_custom_call.1} parent=54 // loop_pre_header
                  _
                $region64: #{tpu_custom_call.1} parent=54 // loop_header
                  %s1060 = sphi 0, %s1064
                  %p1061 = scmp.ge.s32.totalorder %s1060, 1
                  %s1065 = sphi %s896, %s896
                  %s1066 = sphi %s902, %s902
                $region65: #{tpu_custom_call.1} parent=54 // loop_header_branch
                  %1063 = sbr.rel (%p1061) target = $region69
                $region66: #{tpu_custom_call.1} parent=54 // loop_body
                  %v1067 = vld [vmem:[%s1065] sm:%s1058]
                  %1068 = vst [vmem:[%s1066] sm:%s1058] %v1067
                  %v1069 = vld [vmem:[%s1065 + $0x4] sm:%s1058]
                  %1070 = vst [vmem:[%s1066 + $0x4] sm:%s1058] %v1069
                  %v1071 = vld [vmem:[%s1065 + $0x8] sm:%s1058]
                  %1072 = vst [vmem:[%s1066 + $0x8] sm:%s1058] %v1071
                  %v1073 = vld [vmem:[%s1065 + $0xc] sm:%s1058]
                  %1074 = vst [vmem:[%s1066 + $0xc] sm:%s1058] %v1073
                  %v1075 = vld [vmem:[%s1065 + $0x10] sm:%s1058]
                  %1076 = vst [vmem:[%s1066 + $0x10] sm:%s1058] %v1075
                  %v1077 = vld [vmem:[%s1065 + $0x14] sm:%s1058]
                  %1078 = vst [vmem:[%s1066 + $0x14] sm:%s1058] %v1077
                  %v1079 = vld [vmem:[%s1065 + $0x18] sm:%s1058]
                  %1080 = vst [vmem:[%s1066 + $0x18] sm:%s1058] %v1079
                  %v1081 = vld [vmem:[%s1065 + $0x1c] sm:%s1058]
                  %1082 = vst [vmem:[%s1066 + $0x1c] sm:%s1058] %v1081
                  %v1083 = vld [vmem:[%s1065 + $0x20] sm:%s1058]
                  %1084 = vst [vmem:[%s1066 + $0x20] sm:%s1058] %v1083
                  %v1085 = vld [vmem:[%s1065 + $0x24] sm:%s1058]
                  %1086 = vst [vmem:[%s1066 + $0x24] sm:%s1058] %v1085
                  %v1087 = vld [vmem:[%s1065 + $0x28] sm:%s1058]
                  %1088 = vst [vmem:[%s1066 + $0x28] sm:%s1058] %v1087
                  %v1089 = vld [vmem:[%s1065 + $0x2c] sm:%s1058]
                  %1090 = vst [vmem:[%s1066 + $0x2c] sm:%s1058] %v1089
                  %v1091 = vld [vmem:[%s1065 + $0x30] sm:%s1058]
                  %1092 = vst [vmem:[%s1066 + $0x30] sm:%s1058] %v1091
                  %v1093 = vld [vmem:[%s1065 + $0x34] sm:%s1058]
                  %1094 = vst [vmem:[%s1066 + $0x34] sm:%s1058] %v1093
                  %v1095 = vld [vmem:[%s1065 + $0x38] sm:%s1058]
                  %1096 = vst [vmem:[%s1066 + $0x38] sm:%s1058] %v1095
                  %v1097 = vld [vmem:[%s1065 + $0x3c] sm:%s1058]
                  %1098 = vst [vmem:[%s1066 + $0x3c] sm:%s1058] %v1097
                  %v1099 = vld [vmem:[%s1065 + $0x40] sm:%s1058]
                  %1100 = vst [vmem:[%s1066 + $0x40] sm:%s1058] %v1099
                  %v1101 = vld [vmem:[%s1065 + $0x44] sm:%s1058]
                  %1102 = vst [vmem:[%s1066 + $0x44] sm:%s1058] %v1101
                  %v1103 = vld [vmem:[%s1065 + $0x48] sm:%s1058]
                  %1104 = vst [vmem:[%s1066 + $0x48] sm:%s1058] %v1103
                  %v1105 = vld [vmem:[%s1065 + $0x4c] sm:%s1058]
                  %1106 = vst [vmem:[%s1066 + $0x4c] sm:%s1058] %v1105
                  %v1107 = vld [vmem:[%s1065 + $0x50] sm:%s1058]
                  %1108 = vst [vmem:[%s1066 + $0x50] sm:%s1058] %v1107
                  %v1109 = vld [vmem:[%s1065 + $0x54] sm:%s1058]
                  %1110 = vst [vmem:[%s1066 + $0x54] sm:%s1058] %v1109
                  %v1111 = vld [vmem:[%s1065 + $0x58] sm:%s1058]
                  %1112 = vst [vmem:[%s1066 + $0x58] sm:%s1058] %v1111
                  %v1113 = vld [vmem:[%s1065 + $0x5c] sm:%s1058]
                  %1114 = vst [vmem:[%s1066 + $0x5c] sm:%s1058] %v1113
                  %v1115 = vld [vmem:[%s1065 + $0x60] sm:%s1058]
                  %1116 = vst [vmem:[%s1066 + $0x60] sm:%s1058] %v1115
                  %v1117 = vld [vmem:[%s1065 + $0x64] sm:%s1058]
                  %1118 = vst [vmem:[%s1066 + $0x64] sm:%s1058] %v1117
                  %v1119 = vld [vmem:[%s1065 + $0x68] sm:%s1058]
                  %1120 = vst [vmem:[%s1066 + $0x68] sm:%s1058] %v1119
                  %v1121 = vld [vmem:[%s1065 + $0x6c] sm:%s1058]
                  %1122 = vst [vmem:[%s1066 + $0x6c] sm:%s1058] %v1121
                  %v1123 = vld [vmem:[%s1065 + $0x70] sm:%s1058]
                  %1124 = vst [vmem:[%s1066 + $0x70] sm:%s1058] %v1123
                  %v1125 = vld [vmem:[%s1065 + $0x74] sm:%s1058]
                  %1126 = vst [vmem:[%s1066 + $0x74] sm:%s1058] %v1125
                  %v1127 = vld [vmem:[%s1065 + $0x78] sm:%s1058]
                  %1128 = vst [vmem:[%s1066 + $0x78] sm:%s1058] %v1127
                  %v1129 = vld [vmem:[%s1065 + $0x7c] sm:%s1058]
                  %1130 = vst [vmem:[%s1066 + $0x7c] sm:%s1058] %v1129
                  %v1131 = vld [vmem:[%s1065 + $0x80] sm:%s1058]
                  %1132 = vst [vmem:[%s1066 + $0x100] sm:%s1058] %v1131
                  %v1133 = vld [vmem:[%s1065 + $0x84] sm:%s1058]
                  %1134 = vst [vmem:[%s1066 + $0x104] sm:%s1058] %v1133
                  %v1135 = vld [vmem:[%s1065 + $0x88] sm:%s1058]
                  %1136 = vst [vmem:[%s1066 + $0x108] sm:%s1058] %v1135
                  %v1137 = vld [vmem:[%s1065 + $0x8c] sm:%s1058]
                  %1138 = vst [vmem:[%s1066 + $0x10c] sm:%s1058] %v1137
                  %v1139 = vld [vmem:[%s1065 + $0x90] sm:%s1058]
                  %1140 = vst [vmem:[%s1066 + $0x110] sm:%s1058] %v1139
                  %v1141 = vld [vmem:[%s1065 + $0x94] sm:%s1058]
                  %1142 = vst [vmem:[%s1066 + $0x114] sm:%s1058] %v1141
                  %v1143 = vld [vmem:[%s1065 + $0x98] sm:%s1058]
                  %1144 = vst [vmem:[%s1066 + $0x118] sm:%s1058] %v1143
                  %v1145 = vld [vmem:[%s1065 + $0x9c] sm:%s1058]
                  %1146 = vst [vmem:[%s1066 + $0x11c] sm:%s1058] %v1145
                  %v1147 = vld [vmem:[%s1065 + $0xa0] sm:%s1058]
                  %1148 = vst [vmem:[%s1066 + $0x120] sm:%s1058] %v1147
                  %v1149 = vld [vmem:[%s1065 + $0xa4] sm:%s1058]
                  %1150 = vst [vmem:[%s1066 + $0x124] sm:%s1058] %v1149
                  %v1151 = vld [vmem:[%s1065 + $0xa8] sm:%s1058]
                  %1152 = vst [vmem:[%s1066 + $0x128] sm:%s1058] %v1151
                  %v1153 = vld [vmem:[%s1065 + $0xac] sm:%s1058]
                  %1154 = vst [vmem:[%s1066 + $0x12c] sm:%s1058] %v1153
                  %v1155 = vld [vmem:[%s1065 + $0xb0] sm:%s1058]
                  %1156 = vst [vmem:[%s1066 + $0x130] sm:%s1058] %v1155
                  %v1157 = vld [vmem:[%s1065 + $0xb4] sm:%s1058]
                  %1158 = vst [vmem:[%s1066 + $0x134] sm:%s1058] %v1157
                  %v1159 = vld [vmem:[%s1065 + $0xb8] sm:%s1058]
                  %1160 = vst [vmem:[%s1066 + $0x138] sm:%s1058] %v1159
                  %v1161 = vld [vmem:[%s1065 + $0xbc] sm:%s1058]
                  %1162 = vst [vmem:[%s1066 + $0x13c] sm:%s1058] %v1161
                  %v1163 = vld [vmem:[%s1065 + $0xc0] sm:%s1058]
                  %1164 = vst [vmem:[%s1066 + $0x140] sm:%s1058] %v1163
                  %v1165 = vld [vmem:[%s1065 + $0xc4] sm:%s1058]
                  %1166 = vst [vmem:[%s1066 + $0x144] sm:%s1058] %v1165
                  %v1167 = vld [vmem:[%s1065 + $0xc8] sm:%s1058]
                  %1168 = vst [vmem:[%s1066 + $0x148] sm:%s1058] %v1167
                  %v1169 = vld [vmem:[%s1065 + $0xcc] sm:%s1058]
                  %1170 = vst [vmem:[%s1066 + $0x14c] sm:%s1058] %v1169
                  %v1171 = vld [vmem:[%s1065 + $0xd0] sm:%s1058]
                  %1172 = vst [vmem:[%s1066 + $0x150] sm:%s1058] %v1171
                  %v1173 = vld [vmem:[%s1065 + $0xd4] sm:%s1058]
                  %1174 = vst [vmem:[%s1066 + $0x154] sm:%s1058] %v1173
                  %v1175 = vld [vmem:[%s1065 + $0xd8] sm:%s1058]
                  %1176 = vst [vmem:[%s1066 + $0x158] sm:%s1058] %v1175
                  %v1177 = vld [vmem:[%s1065 + $0xdc] sm:%s1058]
                  %1178 = vst [vmem:[%s1066 + $0x15c] sm:%s1058] %v1177
                  %v1179 = vld [vmem:[%s1065 + $0xe0] sm:%s1058]
                  %1180 = vst [vmem:[%s1066 + $0x160] sm:%s1058] %v1179
                  %v1181 = vld [vmem:[%s1065 + $0xe4] sm:%s1058]
                  %1182 = vst [vmem:[%s1066 + $0x164] sm:%s1058] %v1181
                  %v1183 = vld [vmem:[%s1065 + $0xe8] sm:%s1058]
                  %1184 = vst [vmem:[%s1066 + $0x168] sm:%s1058] %v1183
                  %v1185 = vld [vmem:[%s1065 + $0xec] sm:%s1058]
                  %1186 = vst [vmem:[%s1066 + $0x16c] sm:%s1058] %v1185
                  %v1187 = vld [vmem:[%s1065 + $0xf0] sm:%s1058]
                  %1188 = vst [vmem:[%s1066 + $0x170] sm:%s1058] %v1187
                  %v1189 = vld [vmem:[%s1065 + $0xf4] sm:%s1058]
                  %1190 = vst [vmem:[%s1066 + $0x174] sm:%s1058] %v1189
                  %v1191 = vld [vmem:[%s1065 + $0xf8] sm:%s1058]
                  %1192 = vst [vmem:[%s1066 + $0x178] sm:%s1058] %v1191
                  %v1193 = vld [vmem:[%s1065 + $0xfc] sm:%s1058]
                  %1194 = vst [vmem:[%s1066 + $0x17c] sm:%s1058] %v1193
                $region67: #{tpu_custom_call.1} parent=54 // loop_footer
                  %s1064 = sadd.s32 1, %s1060
                $region68: #{tpu_custom_call.1} parent=54 // loop_footer_branch
                  %1059 = sbr.rel target = $region64
                $region69: #{tpu_custom_call.1} parent=54 // loop_exit
                  _
              $region55: #{tpu_custom_call.1} parent=39 // pred_fallthru
                _
            $region40: #{tpu_custom_call.1} parent=35 // pred_fallthru
              _
            // Predicated region
            $region41: #{tpu_custom_call.1} parent=35 // pred_check
              _
            $region42: #{tpu_custom_call.1} parent=35 // pred_check_branch
              %908 = sbr.rel (0) target = $region44
            $region43: #{tpu_custom_call.1} parent=35 // pred_region
              %s910 = ssub.s32 16, 1
              loop: start=0, step=1, limit=1
              $region45: #{tpu_custom_call.1} parent=43 // loop_pre_header
                _
              $region46: #{tpu_custom_call.1} parent=43 // loop_header
                %s912 = sphi 0, %s916
                %p913 = scmp.ge.s32.totalorder %s912, 1
                %s917 = sphi %s896, %s896
                %s918 = sphi %s902, %s902
              $region47: #{tpu_custom_call.1} parent=43 // loop_header_branch
                %915 = sbr.rel (%p913) target = $region51
              $region48: #{tpu_custom_call.1} parent=43 // loop_body
                %v919 = vld [vmem:[%s917] sm:%s910]
                %920 = vst [vmem:[%s918] sm:%s910] %v919
                %v921 = vld [vmem:[%s917 + $0x4] sm:%s910]
                %922 = vst [vmem:[%s918 + $0x4] sm:%s910] %v921
                %v923 = vld [vmem:[%s917 + $0x8] sm:%s910]
                %924 = vst [vmem:[%s918 + $0x8] sm:%s910] %v923
                %v925 = vld [vmem:[%s917 + $0xc] sm:%s910]
                %926 = vst [vmem:[%s918 + $0xc] sm:%s910] %v925
                %v927 = vld [vmem:[%s917 + $0x10] sm:%s910]
                %928 = vst [vmem:[%s918 + $0x10] sm:%s910] %v927
                %v929 = vld [vmem:[%s917 + $0x14] sm:%s910]
                %930 = vst [vmem:[%s918 + $0x14] sm:%s910] %v929
                %v931 = vld [vmem:[%s917 + $0x18] sm:%s910]
                %932 = vst [vmem:[%s918 + $0x18] sm:%s910] %v931
                %v933 = vld [vmem:[%s917 + $0x1c] sm:%s910]
                %934 = vst [vmem:[%s918 + $0x1c] sm:%s910] %v933
                %v935 = vld [vmem:[%s917 + $0x20] sm:%s910]
                %936 = vst [vmem:[%s918 + $0x20] sm:%s910] %v935
                %v937 = vld [vmem:[%s917 + $0x24] sm:%s910]
                %938 = vst [vmem:[%s918 + $0x24] sm:%s910] %v937
                %v939 = vld [vmem:[%s917 + $0x28] sm:%s910]
                %940 = vst [vmem:[%s918 + $0x28] sm:%s910] %v939
                %v941 = vld [vmem:[%s917 + $0x2c] sm:%s910]
                %942 = vst [vmem:[%s918 + $0x2c] sm:%s910] %v941
                %v943 = vld [vmem:[%s917 + $0x30] sm:%s910]
                %944 = vst [vmem:[%s918 + $0x30] sm:%s910] %v943
                %v945 = vld [vmem:[%s917 + $0x34] sm:%s910]
                %946 = vst [vmem:[%s918 + $0x34] sm:%s910] %v945
                %v947 = vld [vmem:[%s917 + $0x38] sm:%s910]
                %948 = vst [vmem:[%s918 + $0x38] sm:%s910] %v947
                %v949 = vld [vmem:[%s917 + $0x3c] sm:%s910]
                %950 = vst [vmem:[%s918 + $0x3c] sm:%s910] %v949
                %v951 = vld [vmem:[%s917 + $0x40] sm:%s910]
                %952 = vst [vmem:[%s918 + $0x40] sm:%s910] %v951
                %v953 = vld [vmem:[%s917 + $0x44] sm:%s910]
                %954 = vst [vmem:[%s918 + $0x44] sm:%s910] %v953
                %v955 = vld [vmem:[%s917 + $0x48] sm:%s910]
                %956 = vst [vmem:[%s918 + $0x48] sm:%s910] %v955
                %v957 = vld [vmem:[%s917 + $0x4c] sm:%s910]
                %958 = vst [vmem:[%s918 + $0x4c] sm:%s910] %v957
                %v959 = vld [vmem:[%s917 + $0x50] sm:%s910]
                %960 = vst [vmem:[%s918 + $0x50] sm:%s910] %v959
                %v961 = vld [vmem:[%s917 + $0x54] sm:%s910]
                %962 = vst [vmem:[%s918 + $0x54] sm:%s910] %v961
                %v963 = vld [vmem:[%s917 + $0x58] sm:%s910]
                %964 = vst [vmem:[%s918 + $0x58] sm:%s910] %v963
                %v965 = vld [vmem:[%s917 + $0x5c] sm:%s910]
                %966 = vst [vmem:[%s918 + $0x5c] sm:%s910] %v965
                %v967 = vld [vmem:[%s917 + $0x60] sm:%s910]
                %968 = vst [vmem:[%s918 + $0x60] sm:%s910] %v967
                %v969 = vld [vmem:[%s917 + $0x64] sm:%s910]
                %970 = vst [vmem:[%s918 + $0x64] sm:%s910] %v969
                %v971 = vld [vmem:[%s917 + $0x68] sm:%s910]
                %972 = vst [vmem:[%s918 + $0x68] sm:%s910] %v971
                %v973 = vld [vmem:[%s917 + $0x6c] sm:%s910]
                %974 = vst [vmem:[%s918 + $0x6c] sm:%s910] %v973
                %v975 = vld [vmem:[%s917 + $0x70] sm:%s910]
                %976 = vst [vmem:[%s918 + $0x70] sm:%s910] %v975
                %v977 = vld [vmem:[%s917 + $0x74] sm:%s910]
                %978 = vst [vmem:[%s918 + $0x74] sm:%s910] %v977
                %v979 = vld [vmem:[%s917 + $0x78] sm:%s910]
                %980 = vst [vmem:[%s918 + $0x78] sm:%s910] %v979
                %v981 = vld [vmem:[%s917 + $0x7c] sm:%s910]
                %982 = vst [vmem:[%s918 + $0x7c] sm:%s910] %v981
                %v983 = vld [vmem:[%s917 + $0x80] sm:%s910]
                %984 = vst [vmem:[%s918 + $0x100] sm:%s910] %v983
                %v985 = vld [vmem:[%s917 + $0x84] sm:%s910]
                %986 = vst [vmem:[%s918 + $0x104] sm:%s910] %v985
                %v987 = vld [vmem:[%s917 + $0x88] sm:%s910]
                %988 = vst [vmem:[%s918 + $0x108] sm:%s910] %v987
                %v989 = vld [vmem:[%s917 + $0x8c] sm:%s910]
                %990 = vst [vmem:[%s918 + $0x10c] sm:%s910] %v989
                %v991 = vld [vmem:[%s917 + $0x90] sm:%s910]
                %992 = vst [vmem:[%s918 + $0x110] sm:%s910] %v991
                %v993 = vld [vmem:[%s917 + $0x94] sm:%s910]
                %994 = vst [vmem:[%s918 + $0x114] sm:%s910] %v993
                %v995 = vld [vmem:[%s917 + $0x98] sm:%s910]
                %996 = vst [vmem:[%s918 + $0x118] sm:%s910] %v995
                %v997 = vld [vmem:[%s917 + $0x9c] sm:%s910]
                %998 = vst [vmem:[%s918 + $0x11c] sm:%s910] %v997
                %v999 = vld [vmem:[%s917 + $0xa0] sm:%s910]
                %1000 = vst [vmem:[%s918 + $0x120] sm:%s910] %v999
                %v1001 = vld [vmem:[%s917 + $0xa4] sm:%s910]
                %1002 = vst [vmem:[%s918 + $0x124] sm:%s910] %v1001
                %v1003 = vld [vmem:[%s917 + $0xa8] sm:%s910]
                %1004 = vst [vmem:[%s918 + $0x128] sm:%s910] %v1003
                %v1005 = vld [vmem:[%s917 + $0xac] sm:%s910]
                %1006 = vst [vmem:[%s918 + $0x12c] sm:%s910] %v1005
                %v1007 = vld [vmem:[%s917 + $0xb0] sm:%s910]
                %1008 = vst [vmem:[%s918 + $0x130] sm:%s910] %v1007
                %v1009 = vld [vmem:[%s917 + $0xb4] sm:%s910]
                %1010 = vst [vmem:[%s918 + $0x134] sm:%s910] %v1009
                %v1011 = vld [vmem:[%s917 + $0xb8] sm:%s910]
                %1012 = vst [vmem:[%s918 + $0x138] sm:%s910] %v1011
                %v1013 = vld [vmem:[%s917 + $0xbc] sm:%s910]
                %1014 = vst [vmem:[%s918 + $0x13c] sm:%s910] %v1013
                %v1015 = vld [vmem:[%s917 + $0xc0] sm:%s910]
                %1016 = vst [vmem:[%s918 + $0x140] sm:%s910] %v1015
                %v1017 = vld [vmem:[%s917 + $0xc4] sm:%s910]
                %1018 = vst [vmem:[%s918 + $0x144] sm:%s910] %v1017
                %v1019 = vld [vmem:[%s917 + $0xc8] sm:%s910]
                %1020 = vst [vmem:[%s918 + $0x148] sm:%s910] %v1019
                %v1021 = vld [vmem:[%s917 + $0xcc] sm:%s910]
                %1022 = vst [vmem:[%s918 + $0x14c] sm:%s910] %v1021
                %v1023 = vld [vmem:[%s917 + $0xd0] sm:%s910]
                %1024 = vst [vmem:[%s918 + $0x150] sm:%s910] %v1023
                %v1025 = vld [vmem:[%s917 + $0xd4] sm:%s910]
                %1026 = vst [vmem:[%s918 + $0x154] sm:%s910] %v1025
                %v1027 = vld [vmem:[%s917 + $0xd8] sm:%s910]
                %1028 = vst [vmem:[%s918 + $0x158] sm:%s910] %v1027
                %v1029 = vld [vmem:[%s917 + $0xdc] sm:%s910]
                %1030 = vst [vmem:[%s918 + $0x15c] sm:%s910] %v1029
                %v1031 = vld [vmem:[%s917 + $0xe0] sm:%s910]
                %1032 = vst [vmem:[%s918 + $0x160] sm:%s910] %v1031
                %v1033 = vld [vmem:[%s917 + $0xe4] sm:%s910]
                %1034 = vst [vmem:[%s918 + $0x164] sm:%s910] %v1033
                %v1035 = vld [vmem:[%s917 + $0xe8] sm:%s910]
                %1036 = vst [vmem:[%s918 + $0x168] sm:%s910] %v1035
                %v1037 = vld [vmem:[%s917 + $0xec] sm:%s910]
                %1038 = vst [vmem:[%s918 + $0x16c] sm:%s910] %v1037
                %v1039 = vld [vmem:[%s917 + $0xf0] sm:%s910]
                %1040 = vst [vmem:[%s918 + $0x170] sm:%s910] %v1039
                %v1041 = vld [vmem:[%s917 + $0xf4] sm:%s910]
                %1042 = vst [vmem:[%s918 + $0x174] sm:%s910] %v1041
                %v1043 = vld [vmem:[%s917 + $0xf8] sm:%s910]
                %1044 = vst [vmem:[%s918 + $0x178] sm:%s910] %v1043
                %v1045 = vld [vmem:[%s917 + $0xfc] sm:%s910]
                %1046 = vst [vmem:[%s918 + $0x17c] sm:%s910] %v1045
              $region49: #{tpu_custom_call.1} parent=43 // loop_footer
                %s916 = sadd.s32 1, %s912
              $region50: #{tpu_custom_call.1} parent=43 // loop_footer_branch
                %911 = sbr.rel target = $region46
              $region51: #{tpu_custom_call.1} parent=43 // loop_exit
                _
            $region44: #{tpu_custom_call.1} parent=35 // pred_fallthru
              _
          $region36: #{tpu_custom_call.1} parent=31 // pred_fallthru
            _
          %1195 = vnop
        $region32: #{tpu_custom_call.1} parent=27 // pred_fallthru
          _
      $region28: #{tpu_custom_call.1} parent=5 // pred_fallthru
        _
      %p1196 = scmp.le.s32.totalorder 2, %s8
      // Predicated region
      $region70: #{tpu_custom_call.1} parent=5 // pred_check
        %p1197 = pneg %p1196
      $region71: #{tpu_custom_call.1} parent=5 // pred_check_branch
        %1199 = sbr.rel (%p1197) target = $region73
      $region72: #{tpu_custom_call.1} parent=5 // pred_region
        %s1200 = ssub.s32 %s8, 2
        // Predicated region
        $region74: #{tpu_custom_call.1} parent=72 // pred_check
          %p1201 = pneg %p84
        $region75: #{tpu_custom_call.1} parent=72 // pred_check_branch
          %1203 = sbr.rel (%p1201) target = $region77
        $region76: #{tpu_custom_call.1} parent=72 // pred_region
          %s1204 = sand.u32 %s69, 1
          %s1205 = sand.u32 %s69, 1
          %s1206 = smul.addr %s1205, 256
          %s1207 = scalar_lea.vmem [#allocation2], %s1206
        $region77: #{tpu_custom_call.1} parent=72 // pred_fallthru
          _
      $region73: #{tpu_custom_call.1} parent=5 // pred_fallthru
        _
    $region6: #{tpu_custom_call.1} parent=1 // loop_footer
      %s12 = sadd.s32 1, %s8
    $region7: #{tpu_custom_call.1} parent=1 // loop_footer_branch
      %7 = sbr.rel target = $region3
    $region8: #{tpu_custom_call.1} parent=1 // loop_exit
      _

</llo_original>
